<compile_context>
chip_gen: v7x
topology: tpu7x:2x2x1
jax: 0.10.0
libtpu: 0.0.40
codegen_flags: <defaults>
</compile_context>

<pallas_src>
import jax
import jax.numpy as jnp
from jax.experimental import pallas as pl
from jax.experimental.pallas import tpu as pltpu

_H_PI = 200                 # pi-head hidden width
_H_V = 100                  # v-head hidden width
_H = _H_PI + _H_V           # fused hidden width (300)
_H_PAD = 384                # fused hidden padded to a multiple of 128 lanes
_BIAS2_LANE = _H_PAD - 1    # padded hidden lane forced to 1.0 (carries layer-2 bias)
_OUT_PAD = 128              # lane-dense packed output width
_TB = 1024                  # batch tile for the grid path (review: 1024-2048)
_SMALL_B = 1024             # B <= this -> single-shot, no-grid path


def _round_up(n, m):
    return ((n + m - 1) // m) * m


def _net_kernel(x_ref, w1_ref, w2_ref, out_ref):
    """out = ReLU6(x_aug @ W1) @ W2  -- both biases folded into the matmuls."""
    h = jnp.dot(x_ref[...], w1_ref[...], preferred_element_type=jnp.float32)
    h = jnp.minimum(jnp.maximum(h, 0.0), 6.0)   # ReLU6; the 1.0 bias lane stays 1.0
    out = jnp.dot(h.astype(w2_ref.dtype), w2_ref[...],
                  preferred_element_type=jnp.float32)
    out_ref[...] = out.astype(out_ref.dtype)


def init_params(key, s_dim, a_dim):
    """Deterministic init mirroring set_init (normal std=0.1 weights, zero bias).
    Weights stored as (in_features, out_features)."""
    k1, k2, k3, k4 = jax.random.split(key, 4)
    std = 0.1
    return {
        "w1_pi": std * jax.random.normal(k1, (s_dim, _H_PI), jnp.float32),
        "b1_pi": jnp.zeros((1, _H_PI), jnp.float32),
        "w2_pi": std * jax.random.normal(k2, (_H_PI, a_dim), jnp.float32),
        "b2_pi": jnp.zeros((1, a_dim), jnp.float32),
        "w1_v": std * jax.random.normal(k3, (s_dim, _H_V), jnp.float32),
        "b1_v": jnp.zeros((1, _H_V), jnp.float32),
        "w2_v": std * jax.random.normal(k4, (_H_V, 1), jnp.float32),
        "b2_v": jnp.zeros((1, 1), jnp.float32),
    }


def pack_params(p, use_bf16=False):
    """One-time packing of the 8 parameter arrays into two tile-aligned slabs
    with both bias vectors folded into the matmul operands."""
    s_dim = p["w1_pi"].shape[0]
    a_dim = p["w2_pi"].shape[1]
    assert a_dim + 1 <= _OUT_PAD
    s_pad = _round_up(s_dim + 1, 8)   # +1 for the constant-1.0 bias-carrier lane

    # slab 1: (s_pad, 384).  Rows [0, s_dim): fused layer-1 weights.
    # Row s_dim (multiplied by the 1.0 lane of x): layer-1 biases, plus a 1.0
    # at _BIAS2_LANE so h[:, _BIAS2_LANE] == 1.0 after ReLU6.
    w1 = jnp.zeros((s_pad, _H_PAD), jnp.float32)
    w1 = w1.at[:s_dim, :_H_PI].set(p["w1_pi"])
    w1 = w1.at[:s_dim, _H_PI:_H].set(p["w1_v"])
    w1 = w1.at[s_dim, :_H_PI].set(p["b1_pi"].reshape(-1))
    w1 = w1.at[s_dim, _H_PI:_H].set(p["b1_v"].reshape(-1))
    w1 = w1.at[s_dim, _BIAS2_LANE].set(1.0)

    # slab 2: (384, 128) block-diagonal layer-2 weights; layer-2 biases live in
    # row _BIAS2_LANE (picked up by the constant 1.0 hidden lane).
    w2 = jnp.zeros((_H_PAD, _OUT_PAD), jnp.float32)
    w2 = w2.at[:_H_PI, :a_dim].set(p["w2_pi"])
    w2 = w2.at[_H_PI:_H, a_dim:a_dim + 1].set(p["w2_v"])
    w2 = w2.at[_BIAS2_LANE, :a_dim].set(p["b2_pi"].reshape(-1))
    w2 = w2.at[_BIAS2_LANE, a_dim].set(p["b2_v"].reshape(()))

    if use_bf16:
        # ~2x MXU throughput + half the weight/activation DMA bytes on all gens;
        # results then no longer meet the 1e-5 tolerance (gate accordingly).
        w1 = w1.astype(jnp.bfloat16)
        w2 = w2.astype(jnp.bfloat16)

    return {"w1": w1, "w2": w2, "s_dim": s_dim, "a_dim": a_dim}


def net_forward_packed(x, packed):
    """Pallas forward returning the packed lane-dense output (B, 128):
    logits in lanes [0, a_dim), value in lane a_dim.  Prefer consuming this
    directly downstream (softmax / loss) to avoid re-reading the slab."""
    B, s_dim = x.shape
    assert s_dim == packed["s_dim"]
    w1, w2 = packed["w1"], packed["w2"]
    s_pad = w1.shape[0]
    in_dtype = w1.dtype

    if B <= _SMALL_B:
        b_pad = _round_up(max(B, 1), 8)
        use_grid = False
    else:
        b_pad = _round_up(B, _TB)      # guarantees >= 2 grid tiles (v7x megacore)
        use_grid = True

    # Augment x with the constant-1.0 bias-carrier lane, zero-pad to (b_pad, s_pad).
    x_pad = jnp.zeros((b_pad, s_pad), in_dtype)
    x_pad = x_pad.at[:B, :s_dim].set(x.astype(in_dtype))
    x_pad = x_pad.at[:B, s_dim].set(jnp.ones((B,), in_dtype))

    out_shape = jax.ShapeDtypeStruct((b_pad, _OUT_PAD), jnp.float32)

    if use_grid:
        # Weights are tiny (~200 KB) so default double-buffering of the
        # constant-index weight specs costs negligible VMEM.
        out = pl.pallas_call(
            _net_kernel,
            out_shape=out_shape,
            grid=(b_pad // _TB,),
            in_specs=[
                pl.BlockSpec((_TB, s_pad), lambda i: (i, 0)),
                pl.BlockSpec(w1.shape, lambda i: (0, 0)),
                pl.BlockSpec(w2.shape, lambda i: (0, 0)),
            ],
            out_specs=pl.BlockSpec((_TB, _OUT_PAD), lambda i: (i, 0)),
            compiler_params=pltpu.CompilerParams(
                dimension_semantics=("parallel",)),
        )(x_pad, w1, w2)
    else:
        vmem = pl.BlockSpec(memory_space=pltpu.MemorySpace.VMEM)
        out = pl.pallas_call(
            _net_kernel,
            out_shape=out_shape,
            in_specs=[vmem, vmem, vmem],
            out_specs=vmem,
        )(x_pad, w1, w2)

    return out[:B]


def net_forward(x, packed):
    """Net.forward semantics: x [B, s_dim] f32 -> (logits [B, a_dim], value [B, 1])."""
    a_dim = packed["a_dim"]
    out = net_forward_packed(x, packed)
    return out[:, :a_dim], out[:, a_dim:a_dim + 1]


def net_forward_ref(x, p):
    """Pure-JAX reference (unfused, unpacked params) for correctness checking."""
    relu6 = lambda t: jnp.minimum(jnp.maximum(t, 0.0), 6.0)
    logits = relu6(x @ p["w1_pi"] + p["b1_pi"]) @ p["w2_pi"] + p["b2_pi"]
    value = relu6(x @ p["w1_v"] + p["b1_v"]) @ p["w2_v"] + p["b2_v"]
    return logits, value


# TODO(synk): choose_action (Categorical sampling) and loss_func are policy/
# training utilities outside Net.forward; they stay in plain JAX.  Fusing
# softmax + pltpu PRNG sampling into the small-batch kernel epilogue is the
# natural follow-up for per-env-step inference.


if __name__ == "__main__":
    key = jax.random.PRNGKey(0)
    k_param, k_x1, k_x2 = jax.random.split(key, 3)

    s_dim, a_dim = 4, 2  # CartPole-like dims
    params = init_params(k_param, s_dim, a_dim)
    packed = pack_params(params)

    # Small-batch (per-env-step inference) path.
    B_small = 8
    x_small = jax.random.normal(k_x1, (B_small, s_dim), jnp.float32)
    logits, value = net_forward(x_small, packed)
    jax.block_until_ready((logits, value))
    logits_ref, value_ref = net_forward_ref(x_small, params)
    assert logits.shape == (B_small, a_dim) and value.shape == (B_small, 1)
    assert jnp.allclose(logits, logits_ref, atol=1e-5, rtol=1e-5)
    assert jnp.allclose(value, value_ref, atol=1e-5, rtol=1e-5)

    # Large-batch grid path (ragged B -> padded to >= 2 "parallel" tiles of _TB).
    B_big = 2056
    x_big = jax.random.normal(k_x2, (B_big, s_dim), jnp.float32)
    logits_b, value_b = net_forward(x_big, packed)
    jax.block_until_ready((logits_b, value_b))
    logits_br, value_br = net_forward_ref(x_big, params)
    assert logits_b.shape == (B_big, a_dim) and value_b.shape == (B_big, 1)
    assert jnp.allclose(logits_b, logits_br, atol=1e-4, rtol=1e-4)
    assert jnp.allclose(value_b, value_br, atol=1e-4, rtol=1e-4)

    print("KERNEL_OK")
</pallas_src>

<mosaic_0001>
module attributes {stable_mosaic.version = 11 : i64} {
  func.func @_net_kernel(%arg0: memref<8x8xf32, #tpu.memory_space<vmem>>, %arg1: memref<8x384xf32, #tpu.memory_space<vmem>>, %arg2: memref<384x128xf32, #tpu.memory_space<vmem>>, %arg3: memref<8x128xf32, #tpu.memory_space<vmem>>) attributes {dimension_semantics = [], scalar_prefetch = 0 : i64, scratch_operands = 0 : i64, tpu.core_type = #tpu.core_type<tc>} {
    %c0 = arith.constant 0 : index
    %c0_0 = arith.constant 0 : index
    %0 = vector.load %arg0[%c0, %c0_0] : memref<8x8xf32, #tpu.memory_space<vmem>>, vector<8x8xf32>
    %c0_1 = arith.constant 0 : index
    %c0_2 = arith.constant 0 : index
    %1 = vector.load %arg1[%c0_1, %c0_2] : memref<8x384xf32, #tpu.memory_space<vmem>>, vector<8x384xf32>
    %cst = arith.constant dense<0.000000e+00> : vector<8x384xf32>
    %2 = tpu.matmul %0, %1, %cst {dimension_numbers = #tpu.dot_dimension_numbers<[1], [0], [0], [1], [0, 0, 1, 1], [], []>} : vector<8x8xf32>, vector<8x384xf32>, vector<8x384xf32> -> vector<8x384xf32>
    %cst_3 = arith.constant 0.000000e+00 : f32
    %3 = vector.broadcast %cst_3 : f32 to vector<8x384xf32>
    %4 = arith.maximumf %2, %3 : vector<8x384xf32>
    %cst_4 = arith.constant 6.000000e+00 : f32
    %5 = vector.broadcast %cst_4 : f32 to vector<8x384xf32>
    %6 = arith.minimumf %4, %5 : vector<8x384xf32>
    %c0_5 = arith.constant 0 : index
    %c0_6 = arith.constant 0 : index
    %7 = vector.load %arg2[%c0_5, %c0_6] : memref<384x128xf32, #tpu.memory_space<vmem>>, vector<384x128xf32>
    %cst_7 = arith.constant dense<0.000000e+00> : vector<8x128xf32>
    %8 = tpu.matmul %6, %7, %cst_7 {dimension_numbers = #tpu.dot_dimension_numbers<[1], [0], [0], [1], [0, 0, 1, 1], [], []>} : vector<8x384xf32>, vector<384x128xf32>, vector<8x128xf32> -> vector<8x128xf32>
    %c0_8 = arith.constant 0 : index
    %c0_9 = arith.constant 0 : index
    %9 = vector.load %arg3[%c0_8, %c0_9] : memref<8x128xf32, #tpu.memory_space<vmem>>, vector<8x128xf32>
    tpu.vector_store %arg3[%c0_8, %c0_9], %8 {strides = array<i32>} : memref<8x128xf32, #tpu.memory_space<vmem>>, vector<8x128xf32>,
    return
  }
}

</mosaic_0001>

<llo_original>
// kernel: tpu_custom_call.1
$region0: #{tpu_custom_call.1}
  #allocation0 [shape = 'u32[]', space=smem, size = 0x4, offset = 0x4, fixed_abs, tag = 'smem constant byte address 0x4 - core index']
  #allocation1 [shape = 'u32[144,128]{1,0:T(1,128)}', space=vmem, size = 0x12000, scoped, tag = 'internal scratch']
  %s0 = inlined_call_operand.hbm [shape: f32[8,8], index: 0, kind: input, shape index: {}]
  %s1 = inlined_call_operand.hbm [shape: f32[8,384], index: 1, kind: input, shape index: {}]
  %s2 = inlined_call_operand.hbm [shape: f32[384,128], index: 2, kind: input, shape index: {}]
  %s3 = inlined_call_operand.hbm [shape: f32[8,128], index: 3, kind: output, shape index: {}]
  %s4 = sld [smem:[#allocation0]]
  $region34: #{tpu_custom_call.1} parent=0
    _
  %s6 = ssub.s32 1, %s4
  %s7 = scalar_select 0, %s6, %s4
  $region1: #{tpu_custom_call.1} parent=0
    #allocation2 [shape = 'u8[4096]{0}', space=vmem, size = 0x1000, scoped, tag = 'input window, operand 0, single buffered']
    #allocation3 [shape = 's32[1]{0}', space=sflag, size = 0x4, scoped, tag = 'scoped memory for tpu_custom_call.1']
    #allocation4 [shape = 's32[1]{0}', space=sflag, size = 0x4, scoped, tag = 'scoped memory for tpu_custom_call.1']
    #allocation5 [shape = 'u8[12288]{0}', space=vmem, size = 0x3000, scoped, tag = 'input window, operand 1, single buffered']
    #allocation6 [shape = 's32[1]{0}', space=sflag, size = 0x4, scoped, tag = 'scoped memory for tpu_custom_call.1']
    #allocation7 [shape = 'u8[196608]{0}', space=vmem, size = 0x30000, scoped, tag = 'input window, operand 2, single buffered']
    #allocation8 [shape = 'u8[4096]{0}', space=vmem, size = 0x1000, scoped, tag = 'output window, operand 0, single buffered']
    %8 = vsyncpa [#allocation3], 0
    %9 = vsyncpa [#allocation6], 0
    %10 = vsyncpa [#allocation4], 0
    // Predicated region
    $region2: #{tpu_custom_call.1} parent=1 // pred_check
      _
    $region3: #{tpu_custom_call.1} parent=1 // pred_check_branch
      %12 = sbr.rel (0) target = $region5
    $region4: #{tpu_custom_call.1} parent=1 // pred_region
      %s14 = ssub.s32 128, 128
      %15 = vsyncadd [#allocation3], %s14
      %s17 = sshll.u32 [#allocation2], 4
      %s18 = int_to_ptr.vmem [resolvable:$true] %s17
      %20 = dma.hbm_to_vmem [thread:$0]  %s0, 128, %s18, [#allocation3]
    $region5: #{tpu_custom_call.1} parent=1 // pred_fallthru
      _
    // Predicated region
    $region6: #{tpu_custom_call.1} parent=1 // pred_check
      _
    $region7: #{tpu_custom_call.1} parent=1 // pred_check_branch
      %22 = sbr.rel (0) target = $region9
    $region8: #{tpu_custom_call.1} parent=1 // pred_region
      %s24 = ssub.s32 384, 384
      %25 = vsyncadd [#allocation6], %s24
      %s27 = sshll.u32 [#allocation5], 4
      %s28 = int_to_ptr.vmem [resolvable:$true] %s27
      %30 = dma.hbm_to_vmem [thread:$0]  %s1, 384, %s28, [#allocation6]
    $region9: #{tpu_custom_call.1} parent=1 // pred_fallthru
      _
    // Predicated region
    $region10: #{tpu_custom_call.1} parent=1 // pred_check
      _
    $region11: #{tpu_custom_call.1} parent=1 // pred_check_branch
      %32 = sbr.rel (0) target = $region13
    $region12: #{tpu_custom_call.1} parent=1 // pred_region
      %s34 = ssub.s32 6144, 6144
      %35 = vsyncadd [#allocation6], %s34
      %s36 = sshll.u32 [#allocation7], 4
      %s37 = int_to_ptr.vmem [resolvable:$true] %s36
      %42 = dma.hbm_to_vmem [thread:$0]  %s2, 6144, %s37, [#allocation6], 128, 128, 8
    $region13: #{tpu_custom_call.1} parent=1 // pred_fallthru
      _
    // Predicated region
    $region14: #{tpu_custom_call.1} parent=1 // pred_check
      _
    $region15: #{tpu_custom_call.1} parent=1 // pred_check_branch
      %44 = sbr.rel (0) target = $region17
    $region16: #{tpu_custom_call.1} parent=1 // pred_region
      %45 = dma.done [#allocation3], 128
    $region17: #{tpu_custom_call.1} parent=1 // pred_fallthru
      _
    // Predicated region
    $region18: #{tpu_custom_call.1} parent=1 // pred_check
      _
    $region19: #{tpu_custom_call.1} parent=1 // pred_check_branch
      %47 = sbr.rel (0) target = $region21
    $region20: #{tpu_custom_call.1} parent=1 // pred_region
      %48 = dma.done [#allocation6], 384
    $region21: #{tpu_custom_call.1} parent=1 // pred_fallthru
      _
    // Predicated region
    $region22: #{tpu_custom_call.1} parent=1 // pred_check
      _
    $region23: #{tpu_custom_call.1} parent=1 // pred_check_branch
      %50 = sbr.rel (0) target = $region25
    $region24: #{tpu_custom_call.1} parent=1 // pred_region
      %51 = dma.done [#allocation6], 6144
    $region25: #{tpu_custom_call.1} parent=1 // pred_fallthru
      _
    %v52 = vld [vmem:[#allocation2] sm:$0xff]
    %v53 = vld [vmem:[#allocation5] sm:$0xff]
    %v54 = vld [vmem:[#allocation5 + $0x8] sm:$0xff]
    %v55 = vld [vmem:[#allocation5 + $0x10] sm:$0xff]
    %vm56 = vcmask 64512
    %v58 = vsel %vm56, %v52, 0
    %60 = vmatprep.subr.mxu0 %v54
    %61 = vmatpush1.msra.mxu0 %v53
    %62 = vmatprep.subr.mxu0 0.0
    %63 = vmatpush1.msra.mxu0 0.0
    %64 = vmatprep.subr.mxu0 0.0
    %65 = vmatpush1.msra.mxu0 0.0
    %66 = vmatprep.subr.mxu0 0.0
    %67 = vmatpush1.msra.mxu0 0.0
    %68 = vmatprep.subr.mxu0 0.0
    %69 = vmatpush1.msra.mxu0 0.0
    %70 = vmatprep.subr.mxu0 0.0
    %71 = vmatpush1.msra.mxu0 0.0
    %72 = vmatprep.subr.mxu0 0.0
    %73 = vmatpush1.msra.mxu0 0.0
    %74 = vmatprep.subr.mxu0 0.0
    %75 = vmatpush1.msra.mxu0 0.0
    %76 = vmatprep.subr.mxu0 0.0
    %77 = vmatpush1.msra.mxu0 0.0
    %78 = vmatprep.subr.mxu0 0.0
    %79 = vmatpush1.msra.mxu0 0.0
    %80 = vmatprep.subr.mxu0 0.0
    %81 = vmatpush1.msra.mxu0 0.0
    %82 = vmatprep.subr.mxu0 0.0
    %83 = vmatpush1.msra.mxu0 0.0
    %84 = vmatprep.subr.mxu0 0.0
    %85 = vmatpush1.msra.mxu0 0.0
    %86 = vmatprep.subr.mxu0 0.0
    %87 = vmatpush1.msra.mxu0 0.0
    %88 = vmatprep.subr.mxu0 0.0
    %89 = vmatpush1.msra.mxu0 0.0
    %90 = vmatprep.subr.mxu0 0.0
    %91 = vmatpush1.msra.mxu0 0.0
    %92 = vmatprep.subr.mxu0 0.0
    %93 = vmatpush1.msra.mxu0 0.0
    %94 = vmatprep.subr.mxu0 0.0
    %95 = vmatpush1.msra.mxu0 0.0
    %96 = vmatprep.subr.mxu0 0.0
    %97 = vmatpush1.msra.mxu0 0.0
    %98 = vmatprep.subr.mxu0 0.0
    %99 = vmatpush1.msra.mxu0 0.0
    %100 = vmatprep.subr.mxu0 0.0
    %101 = vmatpush1.msra.mxu0 0.0
    %102 = vmatprep.subr.mxu0 0.0
    %103 = vmatpush1.msra.mxu0 0.0
    %104 = vmatprep.subr.mxu0 0.0
    %105 = vmatpush1.msra.mxu0 0.0
    %106 = vmatprep.subr.mxu0 0.0
    %107 = vmatpush1.msra.mxu0 0.0
    %108 = vmatprep.subr.mxu0 0.0
    %109 = vmatpush1.msra.mxu0 0.0
    %110 = vmatprep.subr.mxu0 0.0
    %111 = vmatpush1.msra.mxu0 0.0
    %112 = vmatprep.subr.mxu0 0.0
    %113 = vmatpush1.msra.mxu0 0.0
    %114 = vmatprep.subr.mxu0 0.0
    %115 = vmatpush1.msra.mxu0 0.0
    %116 = vmatprep.subr.mxu0 0.0
    %117 = vmatpush1.msra.mxu0 0.0
    %118 = vmatprep.subr.mxu0 0.0
    %119 = vmatpush1.msra.mxu0 0.0
    %120 = vmatprep.subr.mxu0 0.0
    %121 = vmatpush1.msra.mxu0 0.0
    %122 = vmatprep.subr.mxu0 0.0
    %123 = vmatpush1.msra.mxu0 0.0
    %124 = vmatprep.mubr.f32.mxu0 0.0
    %125 = vmatmul.mubr.f32.gmra.mrb[0].mxu0 %v58
    %v126 = vpop.f32.mrb[0].mxu0
    %v127 = vadd.f32 0.0, %v126
    %v128 = vpop.f32.mrb[0].mxu0
    %v129 = vadd.f32 0.0, %v128
    %130 = vdwg.mxu0
    %131 = vmatprep.subr.mxu0 0.0
    %132 = vmatpush1.msra.mxu0 %v55
    %133 = vmatprep.subr.mxu0 0.0
    %134 = vmatpush1.msra.mxu0 0.0
    %135 = vmatprep.subr.mxu0 0.0
    %136 = vmatpush1.msra.mxu0 0.0
    %137 = vmatprep.subr.mxu0 0.0
    %138 = vmatpush1.msra.mxu0 0.0
    %139 = vmatprep.subr.mxu0 0.0
    %140 = vmatpush1.msra.mxu0 0.0
    %141 = vmatprep.subr.mxu0 0.0
    %142 = vmatpush1.msra.mxu0 0.0
    %143 = vmatprep.subr.mxu0 0.0
    %144 = vmatpush1.msra.mxu0 0.0
    %145 = vmatprep.subr.mxu0 0.0
    %146 = vmatpush1.msra.mxu0 0.0
    %147 = vmatprep.subr.mxu0 0.0
    %148 = vmatpush1.msra.mxu0 0.0
    %149 = vmatprep.subr.mxu0 0.0
    %150 = vmatpush1.msra.mxu0 0.0
    %151 = vmatprep.subr.mxu0 0.0
    %152 = vmatpush1.msra.mxu0 0.0
    %153 = vmatprep.subr.mxu0 0.0
    %154 = vmatpush1.msra.mxu0 0.0
    %155 = vmatprep.subr.mxu0 0.0
    %156 = vmatpush1.msra.mxu0 0.0
    %157 = vmatprep.subr.mxu0 0.0
    %158 = vmatpush1.msra.mxu0 0.0
    %159 = vmatprep.subr.mxu0 0.0
    %160 = vmatpush1.msra.mxu0 0.0
    %161 = vmatprep.subr.mxu0 0.0
    %162 = vmatpush1.msra.mxu0 0.0
    %163 = vmatprep.subr.mxu0 0.0
    %164 = vmatpush1.msra.mxu0 0.0
    %165 = vmatprep.subr.mxu0 0.0
    %166 = vmatpush1.msra.mxu0 0.0
    %167 = vmatprep.subr.mxu0 0.0
    %168 = vmatpush1.msra.mxu0 0.0
    %169 = vmatprep.subr.mxu0 0.0
    %170 = vmatpush1.msra.mxu0 0.0
    %171 = vmatprep.subr.mxu0 0.0
    %172 = vmatpush1.msra.mxu0 0.0
    %173 = vmatprep.subr.mxu0 0.0
    %174 = vmatpush1.msra.mxu0 0.0
    %175 = vmatprep.subr.mxu0 0.0
    %176 = vmatpush1.msra.mxu0 0.0
    %177 = vmatprep.subr.mxu0 0.0
    %178 = vmatpush1.msra.mxu0 0.0
    %179 = vmatprep.subr.mxu0 0.0
    %180 = vmatpush1.msra.mxu0 0.0
    %181 = vmatprep.subr.mxu0 0.0
    %182 = vmatpush1.msra.mxu0 0.0
    %183 = vmatprep.subr.mxu0 0.0
    %184 = vmatpush1.msra.mxu0 0.0
    %185 = vmatprep.subr.mxu0 0.0
    %186 = vmatpush1.msra.mxu0 0.0
    %187 = vmatprep.subr.mxu0 0.0
    %188 = vmatpush1.msra.mxu0 0.0
    %189 = vmatprep.subr.mxu0 0.0
    %190 = vmatpush1.msra.mxu0 0.0
    %191 = vmatprep.subr.mxu0 0.0
    %192 = vmatpush1.msra.mxu0 0.0
    %193 = vmatprep.subr.mxu0 0.0
    %194 = vmatpush1.msra.mxu0 0.0
    %195 = vmatprep.mubr.f32.mxu0 0.0
    %196 = vmatmul.mubr.f32.gmra.mrb[0].mxu0 %v58
    %v197 = vpop.f32.mrb[0].mxu0
    %v198 = vadd.f32 0.0, %v197
    %v199 = vpop.f32.mrb[0].mxu0
    %200 = vdwg.mxu0
    %v201 = vmax.f32 %v127, 0.0
    %v202 = vmax.f32 %v129, 0.0
    %v203 = vmax.f32 %v198, 0.0
    %v204 = vmin.f32 %v201, 6.0
    %v205 = vmin.f32 %v202, 6.0
    %v206 = vmin.f32 %v203, 6.0
    %v207 = vld [vmem:[#allocation7] sm:$0xff]
    %v208 = vld [vmem:[#allocation7 + $0x8] sm:$0xff]
    %v209 = vld [vmem:[#allocation7 + $0x10] sm:$0xff]
    %v210 = vld [vmem:[#allocation7 + $0x18] sm:$0xff]
    %v211 = vld [vmem:[#allocation7 + $0x20] sm:$0xff]
    %v212 = vld [vmem:[#allocation7 + $0x28] sm:$0xff]
    %v213 = vld [vmem:[#allocation7 + $0x30] sm:$0xff]
    %v214 = vld [vmem:[#allocation7 + $0x38] sm:$0xff]
    %v215 = vld [vmem:[#allocation7 + $0x40] sm:$0xff]
    %v216 = vld [vmem:[#allocation7 + $0x48] sm:$0xff]
    %v217 = vld [vmem:[#allocation7 + $0x50] sm:$0xff]
    %v218 = vld [vmem:[#allocation7 + $0x58] sm:$0xff]
    %v219 = vld [vmem:[#allocation7 + $0x60] sm:$0xff]
    %v220 = vld [vmem:[#allocation7 + $0x68] sm:$0xff]
    %v221 = vld [vmem:[#allocation7 + $0x70] sm:$0xff]
    %v222 = vld [vmem:[#allocation7 + $0x78] sm:$0xff]
    %v223 = vld [vmem:[#allocation7 + $0x80] sm:$0xff]
    %v224 = vld [vmem:[#allocation7 + $0x88] sm:$0xff]
    %v225 = vld [vmem:[#allocation7 + $0x90] sm:$0xff]
    %v226 = vld [vmem:[#allocation7 + $0x98] sm:$0xff]
    %v227 = vld [vmem:[#allocation7 + $0xa0] sm:$0xff]
    %v228 = vld [vmem:[#allocation7 + $0xa8] sm:$0xff]
    %v229 = vld [vmem:[#allocation7 + $0xb0] sm:$0xff]
    %v230 = vld [vmem:[#allocation7 + $0xb8] sm:$0xff]
    %v231 = vld [vmem:[#allocation7 + $0xc0] sm:$0xff]
    %v232 = vld [vmem:[#allocation7 + $0xc8] sm:$0xff]
    %v233 = vld [vmem:[#allocation7 + $0xd0] sm:$0xff]
    %v234 = vld [vmem:[#allocation7 + $0xd8] sm:$0xff]
    %v235 = vld [vmem:[#allocation7 + $0xe0] sm:$0xff]
    %v236 = vld [vmem:[#allocation7 + $0xe8] sm:$0xff]
    %v237 = vld [vmem:[#allocation7 + $0xf0] sm:$0xff]
    %v238 = vld [vmem:[#allocation7 + $0xf8] sm:$0xff]
    %v239 = vld [vmem:[#allocation7 + $0x100] sm:$0xff]
    %v240 = vld [vmem:[#allocation7 + $0x108] sm:$0xff]
    %v241 = vld [vmem:[#allocation7 + $0x110] sm:$0xff]
    %v242 = vld [vmem:[#allocation7 + $0x118] sm:$0xff]
    %v243 = vld [vmem:[#allocation7 + $0x120] sm:$0xff]
    %v244 = vld [vmem:[#allocation7 + $0x128] sm:$0xff]
    %v245 = vld [vmem:[#allocation7 + $0x130] sm:$0xff]
    %v246 = vld [vmem:[#allocation7 + $0x138] sm:$0xff]
    %v247 = vld [vmem:[#allocation7 + $0x140] sm:$0xff]
    %v248 = vld [vmem:[#allocation7 + $0x148] sm:$0xff]
    %v249 = vld [vmem:[#allocation7 + $0x150] sm:$0xff]
    %v250 = vld [vmem:[#allocation7 + $0x158] sm:$0xff]
    %v251 = vld [vmem:[#allocation7 + $0x160] sm:$0xff]
    %v252 = vld [vmem:[#allocation7 + $0x168] sm:$0xff]
    %v253 = vld [vmem:[#allocation7 + $0x170] sm:$0xff]
    %v254 = vld [vmem:[#allocation7 + $0x178] sm:$0xff]
    %255 = vmatprep.subr.mxu0 0.0
    %256 = vmatpush1.msra.mxu0 %v207
    %257 = vmatprep.subr.mxu0 0.0
    %258 = vmatpush1.msra.mxu0 %v208
    %259 = vmatprep.subr.mxu0 0.0
    %260 = vmatpush1.msra.mxu0 %v209
    %261 = vmatprep.subr.mxu0 0.0
    %262 = vmatpush1.msra.mxu0 %v210
    %263 = vmatprep.subr.mxu0 0.0
    %264 = vmatpush1.msra.mxu0 %v211
    %265 = vmatprep.subr.mxu0 0.0
    %266 = vmatpush1.msra.mxu0 %v212
    %267 = vmatprep.subr.mxu0 0.0
    %268 = vmatpush1.msra.mxu0 %v213
    %269 = vmatprep.subr.mxu0 0.0
    %270 = vmatpush1.msra.mxu0 %v214
    %271 = vmatprep.subr.mxu0 0.0
    %272 = vmatpush1.msra.mxu0 %v215
    %273 = vmatprep.subr.mxu0 0.0
    %274 = vmatpush1.msra.mxu0 %v216
    %275 = vmatprep.subr.mxu0 0.0
    %276 = vmatpush1.msra.mxu0 %v217
    %277 = vmatprep.subr.mxu0 0.0
    %278 = vmatpush1.msra.mxu0 %v218
    %279 = vmatprep.subr.mxu0 0.0
    %280 = vmatpush1.msra.mxu0 %v219
    %281 = vmatprep.subr.mxu0 0.0
    %282 = vmatpush1.msra.mxu0 %v220
    %283 = vmatprep.subr.mxu0 0.0
    %284 = vmatpush1.msra.mxu0 %v221
    %285 = vmatprep.subr.mxu0 0.0
    %286 = vmatpush1.msra.mxu0 %v222
    %287 = vmatprep.subr.mxu0 0.0
    %288 = vmatpush1.msra.mxu0 %v223
    %289 = vmatprep.subr.mxu0 0.0
    %290 = vmatpush1.msra.mxu0 %v224
    %291 = vmatprep.subr.mxu0 0.0
    %292 = vmatpush1.msra.mxu0 %v225
    %293 = vmatprep.subr.mxu0 0.0
    %294 = vmatpush1.msra.mxu0 %v226
    %295 = vmatprep.subr.mxu0 0.0
    %296 = vmatpush1.msra.mxu0 %v227
    %297 = vmatprep.subr.mxu0 0.0
    %298 = vmatpush1.msra.mxu0 %v228
    %299 = vmatprep.subr.mxu0 0.0
    %300 = vmatpush1.msra.mxu0 %v229
    %301 = vmatprep.subr.mxu0 0.0
    %302 = vmatpush1.msra.mxu0 %v230
    %303 = vmatprep.subr.mxu0 0.0
    %304 = vmatpush1.msra.mxu0 %v231
    %305 = vmatprep.subr.mxu0 0.0
    %306 = vmatpush1.msra.mxu0 %v232
    %307 = vmatprep.subr.mxu0 0.0
    %308 = vmatpush1.msra.mxu0 %v233
    %309 = vmatprep.subr.mxu0 0.0
    %310 = vmatpush1.msra.mxu0 %v234
    %311 = vmatprep.subr.mxu0 0.0
    %312 = vmatpush1.msra.mxu0 %v235
    %313 = vmatprep.subr.mxu0 0.0
    %314 = vmatpush1.msra.mxu0 %v236
    %315 = vmatprep.subr.mxu0 0.0
    %316 = vmatpush1.msra.mxu0 %v237
    %317 = vmatprep.subr.mxu0 0.0
    %318 = vmatpush1.msra.mxu0 %v238
    %319 = vmatprep.mubr.f32.mxu0 %v205
    %320 = vmatmul.mubr.f32.gmra.mrb[0].mxu0 %v204
    %v321 = vpop.f32.mrb[0].mxu0
    %v322 = vadd.f32 0.0, %v321
    %v323 = vpop.f32.mrb[0].mxu0
    %324 = vdwg.mxu0
    %325 = vmatprep.subr.mxu0 0.0
    %326 = vmatpush1.msra.mxu0 %v239
    %327 = vmatprep.subr.mxu0 0.0
    %328 = vmatpush1.msra.mxu0 %v240
    %329 = vmatprep.subr.mxu0 0.0
    %330 = vmatpush1.msra.mxu0 %v241
    %331 = vmatprep.subr.mxu0 0.0
    %332 = vmatpush1.msra.mxu0 %v242
    %333 = vmatprep.subr.mxu0 0.0
    %334 = vmatpush1.msra.mxu0 %v243
    %335 = vmatprep.subr.mxu0 0.0
    %336 = vmatpush1.msra.mxu0 %v244
    %337 = vmatprep.subr.mxu0 0.0
    %338 = vmatpush1.msra.mxu0 %v245
    %339 = vmatprep.subr.mxu0 0.0
    %340 = vmatpush1.msra.mxu0 %v246
    %341 = vmatprep.subr.mxu0 0.0
    %342 = vmatpush1.msra.mxu0 %v247
    %343 = vmatprep.subr.mxu0 0.0
    %344 = vmatpush1.msra.mxu0 %v248
    %345 = vmatprep.subr.mxu0 0.0
    %346 = vmatpush1.msra.mxu0 %v249
    %347 = vmatprep.subr.mxu0 0.0
    %348 = vmatpush1.msra.mxu0 %v250
    %349 = vmatprep.subr.mxu0 0.0
    %350 = vmatpush1.msra.mxu0 %v251
    %351 = vmatprep.subr.mxu0 0.0
    %352 = vmatpush1.msra.mxu0 %v252
    %353 = vmatprep.subr.mxu0 0.0
    %354 = vmatpush1.msra.mxu0 %v253
    %355 = vmatprep.subr.mxu0 0.0
    %356 = vmatpush1.msra.mxu0 %v254
    %357 = vmatprep.subr.mxu0 0.0
    %358 = vmatpush1.msra.mxu0 0.0
    %359 = vmatprep.subr.mxu0 0.0
    %360 = vmatpush1.msra.mxu0 0.0
    %361 = vmatprep.subr.mxu0 0.0
    %362 = vmatpush1.msra.mxu0 0.0
    %363 = vmatprep.subr.mxu0 0.0
    %364 = vmatpush1.msra.mxu0 0.0
    %365 = vmatprep.subr.mxu0 0.0
    %366 = vmatpush1.msra.mxu0 0.0
    %367 = vmatprep.subr.mxu0 0.0
    %368 = vmatpush1.msra.mxu0 0.0
    %369 = vmatprep.subr.mxu0 0.0
    %370 = vmatpush1.msra.mxu0 0.0
    %371 = vmatprep.subr.mxu0 0.0
    %372 = vmatpush1.msra.mxu0 0.0
    %373 = vmatprep.subr.mxu0 0.0
    %374 = vmatpush1.msra.mxu0 0.0
    %375 = vmatprep.subr.mxu0 0.0
    %376 = vmatpush1.msra.mxu0 0.0
    %377 = vmatprep.subr.mxu0 0.0
    %378 = vmatpush1.msra.mxu0 0.0
    %379 = vmatprep.subr.mxu0 0.0
    %380 = vmatpush1.msra.mxu0 0.0
    %381 = vmatprep.subr.mxu0 0.0
    %382 = vmatpush1.msra.mxu0 0.0
    %383 = vmatprep.subr.mxu0 0.0
    %384 = vmatpush1.msra.mxu0 0.0
    %385 = vmatprep.subr.mxu0 0.0
    %386 = vmatpush1.msra.mxu0 0.0
    %387 = vmatprep.subr.mxu0 0.0
    %388 = vmatpush1.msra.mxu0 0.0
    %389 = vmatprep.mubr.f32.mxu0 0.0
    %390 = vmatmul.mubr.f32.gmra.mrb[0].mxu0 %v206
    %v391 = vpop.f32.mrb[0].mxu0
    %v392 = vadd.f32 %v322, %v391
    %v393 = vpop.f32.mrb[0].mxu0
    %394 = vdwg.mxu0
    %395 = vst [vmem:[#allocation8] sm:$0xff] %v392
    // Predicated region
    $region26: #{tpu_custom_call.1} parent=1 // pred_check
      _
    $region27: #{tpu_custom_call.1} parent=1 // pred_check_branch
      %397 = sbr.rel (0) target = $region29
    $region28: #{tpu_custom_call.1} parent=1 // pred_region
      %s399 = ssub.s32 128, 128
      %400 = vsyncadd [#allocation4], %s399
      %s402 = sshll.u32 [#allocation8], 4
      %s403 = int_to_ptr.vmem [resolvable:$true] %s402
      %405 = dma.vmem_to_hbm [thread:$0]  %s403, 128, %s3, [#allocation4]
    $region29: #{tpu_custom_call.1} parent=1 // pred_fallthru
      _
    // Predicated region
    $region30: #{tpu_custom_call.1} parent=1 // pred_check
      _
    $region31: #{tpu_custom_call.1} parent=1 // pred_check_branch
      %407 = sbr.rel (0) target = $region33
    $region32: #{tpu_custom_call.1} parent=1 // pred_region
      %408 = dma.done [#allocation4], 128
    $region33: #{tpu_custom_call.1} parent=1 // pred_fallthru
      _
    %409 = vsyncpa [#allocation3], 1
    %410 = vsyncpa [#allocation6], 1
    %411 = vsyncpa [#allocation4], 1

</llo_original>
